<compile_context>
chip_gen: v7x
topology: tpu7x:2x2x1
jax: 0.10.0
libtpu: 0.0.40
codegen_flags: <defaults>
</compile_context>

<pallas_src>
import functools
import math

import jax
import jax.numpy as jnp
import numpy as np
from jax.experimental import pallas as pl
from jax.experimental.pallas import tpu as pltpu


def _log_l1_kernel(p_ref, t_ref, sel_ref, o_ref, *, inv_d, tm,
                   valid_packed_rows, ragged):
    """One grid step: |p - t| on a (tm, G*D) tile, per-row means via a selector
    matmul on the MXU, clamp+log, and a partial log-sum written to this step's
    private output block."""
    diff = jnp.abs(p_ref[...].astype(jnp.float32) - t_ref[...].astype(jnp.float32))
    # Segmented sum over groups of D lanes == per original-row sums, on the MXU.
    row_sum = jnp.dot(diff, sel_ref[...],
                      preferred_element_type=jnp.float32,
                      precision=jax.lax.Precision.HIGHEST)          # (tm, G)
    row_log = jnp.log(jnp.maximum(row_sum * inv_d, 1e-20))          # clamp().log()
    if ragged:  # mask out-of-bounds rows of the partial trailing tile
        i = pl.program_id(0)
        ridx = i * tm + jax.lax.broadcasted_iota(jnp.int32, row_log.shape, 0)
        row_log = jnp.where(ridx < valid_packed_rows, row_log, 0.0)
    partial = jnp.sum(row_log)
    o_ref[...] = jnp.full(o_ref.shape, partial, dtype=jnp.float32)


def _pack_factor(rows: int, d: int) -> int:
    """Rows packed per wide row; a power-of-two divisor of both `rows` and 128."""
    g = math.gcd(rows, 128)
    while g > 1 and g * d > 4096:        # keep packed lane width reasonable
        g //= 2
    while g > 1 and rows // g < 8:       # keep >= 8 packed rows for tidy blocks
        g //= 2
    return g


def _vmem_capacity_bytes() -> int:
    try:
        return int(pltpu.get_tpu_info().vmem_capacity_bytes)
    except Exception:
        return 64 * 1024 * 1024          # conservative (v7x-sized) fallback


def log_l1_loss(predictions: jax.Array, targets: jax.Array) -> jax.Array:
    """Pallas implementation of LogL1Loss.forward. Returns a float32 scalar."""
    assert predictions.shape == targets.shape
    d = int(predictions.shape[-1])
    rows = int(np.prod(predictions.shape[:-1]))

    g = _pack_factor(rows, d)
    dp = g * d                           # packed lane width
    packed_rows = rows // g

    # Free reshape: G consecutive rows are contiguous, so this is metadata only.
    p2 = predictions.reshape(packed_rows, dp)
    t2 = targets.reshape(packed_rows, dp)

    # 0/1 selector: column r picks the D lanes of packed sub-row r.
    sel = jnp.asarray(
        (np.arange(dp)[:, None] // d == np.arange(g)[None, :]).astype(np.float32))

    # ---- row-tile size from the VMEM budget (generation aware) ----
    vmem_bytes = _vmem_capacity_bytes()
    budget = vmem_bytes // 2
    itemsize = jnp.dtype(predictions.dtype).itemsize
    per_tm = 2 * 2 * dp * itemsize       # two inputs, double buffered
    fixed = 2 * dp * g * 4 + (1 << 20)   # selector buffers + slack
    tm_cap = max(8, min(2048, ((budget - fixed) // per_tm) // 8 * 8))

    if packed_rows < 8:
        tm = packed_rows                 # block == full dim is always legal
    else:
        tm = min(tm_cap, ((packed_rows + 7) // 8) * 8)
    grid = (packed_rows + tm - 1) // tm
    ragged = (grid * tm != packed_rows)

    kernel = functools.partial(
        _log_l1_kernel, inv_d=1.0 / d, tm=tm,
        valid_packed_rows=packed_rows, ragged=ragged)

    out = pl.pallas_call(
        kernel,
        out_shape=jax.ShapeDtypeStruct((grid, 8, 128), jnp.float32),
        grid_spec=pltpu.PrefetchScalarGridSpec(
            num_scalar_prefetch=0,
            grid=(grid,),
            in_specs=[
                pl.BlockSpec((tm, dp), lambda i: (i, 0)),
                pl.BlockSpec((tm, dp), lambda i: (i, 0)),
                pl.BlockSpec((dp, g), lambda i: (0, 0)),
            ],
            out_specs=pl.BlockSpec((1, 8, 128), lambda i: (i, 0, 0)),
        ),
        compiler_params=pltpu.CompilerParams(
            dimension_semantics=("parallel",),
            vmem_limit_bytes=int(vmem_bytes * 3 // 4),
        ),
    )(p2, t2, sel)

    # Each grid step wrote its partial log-sum (broadcast over its block);
    # finish with a tiny reduction + the mean over all rows.
    return jnp.sum(out[:, 0, 0]) / rows


if __name__ == "__main__":
    key = jax.random.PRNGKey(0)
    k1, k2 = jax.random.split(key)
    shape = (2, 4, 16, 16)   # NCHW, as the PyTorch module would see
    predictions = jax.random.normal(k1, shape, dtype=jnp.float32)
    targets = jax.random.normal(k2, shape, dtype=jnp.float32)

    loss = log_l1_loss(predictions, targets)
    loss = jax.block_until_ready(loss)

    # Reference (same semantics as the PyTorch module).
    ref = jnp.mean(
        jnp.log(jnp.clip(jnp.mean(jnp.abs(predictions - targets), axis=-1), 1e-20)))
    assert np.allclose(np.asarray(loss), np.asarray(ref), rtol=1e-4, atol=1e-5), (loss, ref)

    print("KERNEL_OK")
</pallas_src>

<mosaic_0001>
module attributes {stable_mosaic.version = 11 : i64} {
  func.func @_log_l1_kernel(%arg0: i32, %arg1: memref<8x256xf32, #tpu.memory_space<vmem>>, %arg2: memref<8x256xf32, #tpu.memory_space<vmem>>, %arg3: memref<256x16xf32, #tpu.memory_space<vmem>>, %arg4: memref<1x8x128xf32, #tpu.memory_space<vmem>>) attributes {dimension_semantics = [#tpu.dimension_semantics<parallel>], iteration_bounds = array<i64: 1>, scalar_prefetch = 0 : i64, scratch_operands = 0 : i64, tpu.core_type = #tpu.core_type<tc>, window_params = [{transform_indices = @transform_0, window_bounds = array<i64: 8, 256>}, {transform_indices = @transform_1, window_bounds = array<i64: 8, 256>}, {pipeline_mode = #tpu.pipeline_mode<synchronous>, transform_indices = @transform_2, window_bounds = array<i64: 256, 16>}, {transform_indices = @transform_3, window_bounds = array<i64: 1, 8, 128>}]} {
    %c0 = arith.constant 0 : index
    %c0_0 = arith.constant 0 : index
    %0 = vector.load %arg1[%c0, %c0_0] : memref<8x256xf32, #tpu.memory_space<vmem>>, vector<8x256xf32>
    %c0_1 = arith.constant 0 : index
    %c0_2 = arith.constant 0 : index
    %1 = vector.load %arg2[%c0_1, %c0_2] : memref<8x256xf32, #tpu.memory_space<vmem>>, vector<8x256xf32>
    %2 = arith.subf %0, %1 : vector<8x256xf32>
    %3 = math.absf %2 : vector<8x256xf32>
    %c0_3 = arith.constant 0 : index
    %c0_4 = arith.constant 0 : index
    %4 = vector.load %arg3[%c0_3, %c0_4] : memref<256x16xf32, #tpu.memory_space<vmem>>, vector<256x16xf32>
    %cst = arith.constant dense<0.000000e+00> : vector<8x16xf32>
    %5 = tpu.matmul %3, %4, %cst {dimension_numbers = #tpu.dot_dimension_numbers<[1], [0], [0], [1], [0, 0, 1, 1], [], []>, precision = #tpu.contract_precision<fp32>} : vector<8x256xf32>, vector<256x16xf32>, vector<8x16xf32> -> vector<8x16xf32>
    %cst_5 = arith.constant 6.250000e-02 : f32
    %6 = vector.broadcast %cst_5 : f32 to vector<8x16xf32>
    %7 = arith.mulf %5, %6 : vector<8x16xf32>
    %cst_6 = arith.constant 9.99999968E-21 : f32
    %8 = vector.broadcast %cst_6 : f32 to vector<8x16xf32>
    %9 = arith.maximumf %7, %8 : vector<8x16xf32>
    %10 = math.log %9 : vector<8x16xf32>
    %11 = vector.shape_cast %10 : vector<8x16xf32> to vector<1x8x16xf32>
    %cst_7 = arith.constant dense<0.000000e+00> : vector<1xf32>
    %12 = vector.multi_reduction <add>, %11, %cst_7 [1, 2] : vector<1x8x16xf32> to vector<1xf32>
    %13 = vector.shape_cast %12 : vector<1xf32> to vector<1x1x1xf32>
    %14 = vector.extract %13[0, 0, 0] : f32 from vector<1x1x1xf32>
    %15 = vector.broadcast %14 : f32 to vector<1x8x128xf32>
    %c0_8 = arith.constant 0 : index
    %c0_9 = arith.constant 0 : index
    %c0_10 = arith.constant 0 : index
    %16 = vector.load %arg4[%c0_8, %c0_9, %c0_10] : memref<1x8x128xf32, #tpu.memory_space<vmem>>, vector<1x8x128xf32>
    tpu.vector_store %arg4[%c0_8, %c0_9, %c0_10], %15 {strides = array<i32>} : memref<1x8x128xf32, #tpu.memory_space<vmem>>, vector<1x8x128xf32>,
    return
  }
  func.func @transform_0(%arg0: i32) -> (i32, i32) {
    %c0_i32 = arith.constant 0 : i32
    %c0_i32_0 = arith.constant 0 : i32
    return %arg0, %c0_i32 : i32, i32
  }
  func.func @transform_1(%arg0: i32) -> (i32, i32) {
    %c0_i32 = arith.constant 0 : i32
    %c0_i32_0 = arith.constant 0 : i32
    return %arg0, %c0_i32 : i32, i32
  }
  func.func @transform_2(%arg0: i32) -> (i32, i32) {
    %c0_i32 = arith.constant 0 : i32
    %c0_i32_0 = arith.constant 0 : i32
    %c0_i32_1 = arith.constant 0 : i32
    return %c0_i32, %c0_i32_0 : i32, i32
  }
  func.func @transform_3(%arg0: i32) -> (i32, i32, i32) {
    %c0_i32 = arith.constant 0 : i32
    %c0_i32_0 = arith.constant 0 : i32
    %c0_i32_1 = arith.constant 0 : i32
    return %arg0, %c0_i32, %c0_i32_0 : i32, i32, i32
  }
}

</mosaic_0001>

<llo_original>
// kernel: tpu_custom_call.1
$region0: #{tpu_custom_call.1}
  #allocation0 [shape = 'u32[]', space=smem, size = 0x4, offset = 0x4, fixed_abs, tag = 'smem constant byte address 0x4 - core index']
  #allocation1 [shape = 'u32[144,128]{1,0:T(1,128)}', space=vmem, size = 0x12000, scoped, tag = 'internal scratch']
  %s0 = inlined_call_operand.vmem [shape: f32[8,256], index: 0, kind: input, shape index: {}]
  %s1 = inlined_call_operand.vmem [shape: f32[8,256], index: 1, kind: input, shape index: {}]
  %s2 = inlined_call_operand.vmem [shape: f32[256,16], index: 2, kind: input, shape index: {}]
  %s3 = inlined_call_operand.hbm [shape: f32[1,8,128], index: 3, kind: output, shape index: {}]
  %s4 = sld [smem:[#allocation0]]
  $region22: #{tpu_custom_call.1} parent=0
    _
  %s6 = ssub.s32 1, %s4
  %s7 = scalar_select 0, %s6, %s4
  $region1: #{tpu_custom_call.1} parent=0
    #allocation2 [shape = 'u8[4096]{0}', space=vmem, size = 0x1000, scoped, tag = 'output window, operand 0, single buffered']
    #allocation3 [shape = 's32[1]{0}', space=sflag, size = 0x4, scoped, tag = 'scoped memory for tpu_custom_call.1']
    %8 = vsyncpa [#allocation3], 0
    // Predicated region
    $region2: #{tpu_custom_call.1} parent=1 // pred_check
      _
    $region3: #{tpu_custom_call.1} parent=1 // pred_check_branch
      %10 = sbr.rel (0) target = $region5
    $region4: #{tpu_custom_call.1} parent=1 // pred_region
      _
    $region5: #{tpu_custom_call.1} parent=1 // pred_fallthru
      _
    // Predicated region
    $region6: #{tpu_custom_call.1} parent=1 // pred_check
      _
    $region7: #{tpu_custom_call.1} parent=1 // pred_check_branch
      %12 = sbr.rel (0) target = $region9
    $region8: #{tpu_custom_call.1} parent=1 // pred_region
      _
    $region9: #{tpu_custom_call.1} parent=1 // pred_fallthru
      _
    // Predicated region
    $region10: #{tpu_custom_call.1} parent=1 // pred_check
      _
    $region11: #{tpu_custom_call.1} parent=1 // pred_check_branch
      %14 = sbr.rel (0) target = $region13
    $region12: #{tpu_custom_call.1} parent=1 // pred_region
      _
    $region13: #{tpu_custom_call.1} parent=1 // pred_fallthru
      _
    %v15 = vld [vmem:[%s0] sm:$0xff]
    %v16 = vld [vmem:[%s0 + $0x8] sm:$0xff]
    %v17 = vld [vmem:[%s1] sm:$0xff]
    %v18 = vld [vmem:[%s1 + $0x8] sm:$0xff]
    %v19 = vsub.f32 %v15, %v17
    %v20 = vsub.f32 %v16, %v18
    %v21 = vand.u32 2147483647, %v19
    %v22 = vand.u32 2147483647, %v20
    %v23 = vld [vmem:[%s2] sm:$0xff]
    %v24 = vld [vmem:[%s2 + $0x8] sm:$0xff]
    %v25 = vld [vmem:[%s2 + $0x10] sm:$0xff]
    %v26 = vld [vmem:[%s2 + $0x18] sm:$0xff]
    %v27 = vld [vmem:[%s2 + $0x20] sm:$0xff]
    %v28 = vld [vmem:[%s2 + $0x28] sm:$0xff]
    %v29 = vld [vmem:[%s2 + $0x30] sm:$0xff]
    %v30 = vld [vmem:[%s2 + $0x38] sm:$0xff]
    %v31 = vld [vmem:[%s2 + $0x40] sm:$0xff]
    %v32 = vld [vmem:[%s2 + $0x48] sm:$0xff]
    %v33 = vld [vmem:[%s2 + $0x50] sm:$0xff]
    %v34 = vld [vmem:[%s2 + $0x58] sm:$0xff]
    %v35 = vld [vmem:[%s2 + $0x60] sm:$0xff]
    %v36 = vld [vmem:[%s2 + $0x68] sm:$0xff]
    %v37 = vld [vmem:[%s2 + $0x70] sm:$0xff]
    %v38 = vld [vmem:[%s2 + $0x78] sm:$0xff]
    %v39 = vld [vmem:[%s2 + $0x80] sm:$0xff]
    %v40 = vld [vmem:[%s2 + $0x88] sm:$0xff]
    %v41 = vld [vmem:[%s2 + $0x90] sm:$0xff]
    %v42 = vld [vmem:[%s2 + $0x98] sm:$0xff]
    %v43 = vld [vmem:[%s2 + $0xa0] sm:$0xff]
    %v44 = vld [vmem:[%s2 + $0xa8] sm:$0xff]
    %v45 = vld [vmem:[%s2 + $0xb0] sm:$0xff]
    %v46 = vld [vmem:[%s2 + $0xb8] sm:$0xff]
    %v47 = vld [vmem:[%s2 + $0xc0] sm:$0xff]
    %v48 = vld [vmem:[%s2 + $0xc8] sm:$0xff]
    %v49 = vld [vmem:[%s2 + $0xd0] sm:$0xff]
    %v50 = vld [vmem:[%s2 + $0xd8] sm:$0xff]
    %v51 = vld [vmem:[%s2 + $0xe0] sm:$0xff]
    %v52 = vld [vmem:[%s2 + $0xe8] sm:$0xff]
    %v53 = vld [vmem:[%s2 + $0xf0] sm:$0xff]
    %v54 = vld [vmem:[%s2 + $0xf8] sm:$0xff]
    %55 = vmatprep.subr.mxu0 0.0
    %v56 = vand.u32 %v23, 4294901760
    %57 = vmatpush1.msra.mxu0 %v56
    %58 = vmatprep.subr.mxu0 0.0
    %v59 = vand.u32 %v24, 4294901760
    %60 = vmatpush1.msra.mxu0 %v59
    %61 = vmatprep.subr.mxu0 0.0
    %v62 = vand.u32 %v25, 4294901760
    %63 = vmatpush1.msra.mxu0 %v62
    %64 = vmatprep.subr.mxu0 0.0
    %v65 = vand.u32 %v26, 4294901760
    %66 = vmatpush1.msra.mxu0 %v65
    %67 = vmatprep.subr.mxu0 0.0
    %v68 = vand.u32 %v27, 4294901760
    %69 = vmatpush1.msra.mxu0 %v68
    %70 = vmatprep.subr.mxu0 0.0
    %v71 = vand.u32 %v28, 4294901760
    %72 = vmatpush1.msra.mxu0 %v71
    %73 = vmatprep.subr.mxu0 0.0
    %v74 = vand.u32 %v29, 4294901760
    %75 = vmatpush1.msra.mxu0 %v74
    %76 = vmatprep.subr.mxu0 0.0
    %v77 = vand.u32 %v30, 4294901760
    %78 = vmatpush1.msra.mxu0 %v77
    %79 = vmatprep.subr.mxu0 0.0
    %v80 = vand.u32 %v31, 4294901760
    %81 = vmatpush1.msra.mxu0 %v80
    %82 = vmatprep.subr.mxu0 0.0
    %v83 = vand.u32 %v32, 4294901760
    %84 = vmatpush1.msra.mxu0 %v83
    %85 = vmatprep.subr.mxu0 0.0
    %v86 = vand.u32 %v33, 4294901760
    %87 = vmatpush1.msra.mxu0 %v86
    %88 = vmatprep.subr.mxu0 0.0
    %v89 = vand.u32 %v34, 4294901760
    %90 = vmatpush1.msra.mxu0 %v89
    %91 = vmatprep.subr.mxu0 0.0
    %v92 = vand.u32 %v35, 4294901760
    %93 = vmatpush1.msra.mxu0 %v92
    %94 = vmatprep.subr.mxu0 0.0
    %v95 = vand.u32 %v36, 4294901760
    %96 = vmatpush1.msra.mxu0 %v95
    %97 = vmatprep.subr.mxu0 0.0
    %v98 = vand.u32 %v37, 4294901760
    %99 = vmatpush1.msra.mxu0 %v98
    %100 = vmatprep.subr.mxu0 0.0
    %v101 = vand.u32 %v38, 4294901760
    %102 = vmatpush1.msra.mxu0 %v101
    %103 = vmatprep.subr.mxu0 0.0
    %v104 = vand.u32 %v39, 4294901760
    %105 = vmatpush1.msra.mxu0 %v104
    %106 = vmatprep.subr.mxu0 0.0
    %v107 = vand.u32 %v40, 4294901760
    %108 = vmatpush1.msra.mxu0 %v107
    %109 = vmatprep.subr.mxu0 0.0
    %v110 = vand.u32 %v41, 4294901760
    %111 = vmatpush1.msra.mxu0 %v110
    %112 = vmatprep.subr.mxu0 0.0
    %v113 = vand.u32 %v42, 4294901760
    %114 = vmatpush1.msra.mxu0 %v113
    %115 = vmatprep.subr.mxu0 0.0
    %v116 = vand.u32 %v43, 4294901760
    %117 = vmatpush1.msra.mxu0 %v116
    %118 = vmatprep.subr.mxu0 0.0
    %v119 = vand.u32 %v44, 4294901760
    %120 = vmatpush1.msra.mxu0 %v119
    %121 = vmatprep.subr.mxu0 0.0
    %v122 = vand.u32 %v45, 4294901760
    %123 = vmatpush1.msra.mxu0 %v122
    %124 = vmatprep.subr.mxu0 0.0
    %v125 = vand.u32 %v46, 4294901760
    %126 = vmatpush1.msra.mxu0 %v125
    %127 = vmatprep.subr.mxu0 0.0
    %v128 = vand.u32 %v47, 4294901760
    %129 = vmatpush1.msra.mxu0 %v128
    %130 = vmatprep.subr.mxu0 0.0
    %v131 = vand.u32 %v48, 4294901760
    %132 = vmatpush1.msra.mxu0 %v131
    %133 = vmatprep.subr.mxu0 0.0
    %v134 = vand.u32 %v49, 4294901760
    %135 = vmatpush1.msra.mxu0 %v134
    %136 = vmatprep.subr.mxu0 0.0
    %v137 = vand.u32 %v50, 4294901760
    %138 = vmatpush1.msra.mxu0 %v137
    %139 = vmatprep.subr.mxu0 0.0
    %v140 = vand.u32 %v51, 4294901760
    %141 = vmatpush1.msra.mxu0 %v140
    %142 = vmatprep.subr.mxu0 0.0
    %v143 = vand.u32 %v52, 4294901760
    %144 = vmatpush1.msra.mxu0 %v143
    %145 = vmatprep.subr.mxu0 0.0
    %v146 = vand.u32 %v53, 4294901760
    %147 = vmatpush1.msra.mxu0 %v146
    %148 = vmatprep.subr.mxu0 0.0
    %v149 = vand.u32 %v54, 4294901760
    %150 = vmatpush1.msra.mxu0 %v149
    %v151 = vand.u32 %v22, 4294901760
    %v152 = vsub.f32 %v22, %v151
    %v153 = vand.u32 %v152, 4294901760
    %v154 = vsub.f32 %v152, %v153
    %v155 = vand.u32 %v154, 4294901760
    %156 = vmatprep.mubr.f32.mxu0 %v155
    %v157 = vand.u32 %v21, 4294901760
    %v158 = vsub.f32 %v21, %v157
    %v159 = vand.u32 %v158, 4294901760
    %v160 = vsub.f32 %v158, %v159
    %v161 = vand.u32 %v160, 4294901760
    %162 = vmatmul.mubr.f32.gmra.mrb[0].mxu0 %v161
    %v163 = vpop.f32.mrb[0].mxu0
    %v164 = vadd.f32 0.0, %v163
    %v165 = vpop.f32.mrb[0].mxu0
    %166 = vdwg.mxu0
    %167 = vmatprep.subr.mxu0 0.0
    %v168 = vand.u32 %v23, 4294901760
    %v169 = vsub.f32 %v23, %v168
    %v170 = vand.u32 %v169, 4294901760
    %v171 = vsub.f32 %v169, %v170
    %v172 = vand.u32 %v171, 4294901760
    %173 = vmatpush1.msra.mxu0 %v172
    %174 = vmatprep.subr.mxu0 0.0
    %v175 = vand.u32 %v24, 4294901760
    %v176 = vsub.f32 %v24, %v175
    %v177 = vand.u32 %v176, 4294901760
    %v178 = vsub.f32 %v176, %v177
    %v179 = vand.u32 %v178, 4294901760
    %180 = vmatpush1.msra.mxu0 %v179
    %181 = vmatprep.subr.mxu0 0.0
    %v182 = vand.u32 %v25, 4294901760
    %v183 = vsub.f32 %v25, %v182
    %v184 = vand.u32 %v183, 4294901760
    %v185 = vsub.f32 %v183, %v184
    %v186 = vand.u32 %v185, 4294901760
    %187 = vmatpush1.msra.mxu0 %v186
    %188 = vmatprep.subr.mxu0 0.0
    %v189 = vand.u32 %v26, 4294901760
    %v190 = vsub.f32 %v26, %v189
    %v191 = vand.u32 %v190, 4294901760
    %v192 = vsub.f32 %v190, %v191
    %v193 = vand.u32 %v192, 4294901760
    %194 = vmatpush1.msra.mxu0 %v193
    %195 = vmatprep.subr.mxu0 0.0
    %v196 = vand.u32 %v27, 4294901760
    %v197 = vsub.f32 %v27, %v196
    %v198 = vand.u32 %v197, 4294901760
    %v199 = vsub.f32 %v197, %v198
    %v200 = vand.u32 %v199, 4294901760
    %201 = vmatpush1.msra.mxu0 %v200
    %202 = vmatprep.subr.mxu0 0.0
    %v203 = vand.u32 %v28, 4294901760
    %v204 = vsub.f32 %v28, %v203
    %v205 = vand.u32 %v204, 4294901760
    %v206 = vsub.f32 %v204, %v205
    %v207 = vand.u32 %v206, 4294901760
    %208 = vmatpush1.msra.mxu0 %v207
    %209 = vmatprep.subr.mxu0 0.0
    %v210 = vand.u32 %v29, 4294901760
    %v211 = vsub.f32 %v29, %v210
    %v212 = vand.u32 %v211, 4294901760
    %v213 = vsub.f32 %v211, %v212
    %v214 = vand.u32 %v213, 4294901760
    %215 = vmatpush1.msra.mxu0 %v214
    %216 = vmatprep.subr.mxu0 0.0
    %v217 = vand.u32 %v30, 4294901760
    %v218 = vsub.f32 %v30, %v217
    %v219 = vand.u32 %v218, 4294901760
    %v220 = vsub.f32 %v218, %v219
    %v221 = vand.u32 %v220, 4294901760
    %222 = vmatpush1.msra.mxu0 %v221
    %223 = vmatprep.subr.mxu0 0.0
    %v224 = vand.u32 %v31, 4294901760
    %v225 = vsub.f32 %v31, %v224
    %v226 = vand.u32 %v225, 4294901760
    %v227 = vsub.f32 %v225, %v226
    %v228 = vand.u32 %v227, 4294901760
    %229 = vmatpush1.msra.mxu0 %v228
    %230 = vmatprep.subr.mxu0 0.0
    %v231 = vand.u32 %v32, 4294901760
    %v232 = vsub.f32 %v32, %v231
    %v233 = vand.u32 %v232, 4294901760
    %v234 = vsub.f32 %v232, %v233
    %v235 = vand.u32 %v234, 4294901760
    %236 = vmatpush1.msra.mxu0 %v235
    %237 = vmatprep.subr.mxu0 0.0
    %v238 = vand.u32 %v33, 4294901760
    %v239 = vsub.f32 %v33, %v238
    %v240 = vand.u32 %v239, 4294901760
    %v241 = vsub.f32 %v239, %v240
    %v242 = vand.u32 %v241, 4294901760
    %243 = vmatpush1.msra.mxu0 %v242
    %244 = vmatprep.subr.mxu0 0.0
    %v245 = vand.u32 %v34, 4294901760
    %v246 = vsub.f32 %v34, %v245
    %v247 = vand.u32 %v246, 4294901760
    %v248 = vsub.f32 %v246, %v247
    %v249 = vand.u32 %v248, 4294901760
    %250 = vmatpush1.msra.mxu0 %v249
    %251 = vmatprep.subr.mxu0 0.0
    %v252 = vand.u32 %v35, 4294901760
    %v253 = vsub.f32 %v35, %v252
    %v254 = vand.u32 %v253, 4294901760
    %v255 = vsub.f32 %v253, %v254
    %v256 = vand.u32 %v255, 4294901760
    %257 = vmatpush1.msra.mxu0 %v256
    %258 = vmatprep.subr.mxu0 0.0
    %v259 = vand.u32 %v36, 4294901760
    %v260 = vsub.f32 %v36, %v259
    %v261 = vand.u32 %v260, 4294901760
    %v262 = vsub.f32 %v260, %v261
    %v263 = vand.u32 %v262, 4294901760
    %264 = vmatpush1.msra.mxu0 %v263
    %265 = vmatprep.subr.mxu0 0.0
    %v266 = vand.u32 %v37, 4294901760
    %v267 = vsub.f32 %v37, %v266
    %v268 = vand.u32 %v267, 4294901760
    %v269 = vsub.f32 %v267, %v268
    %v270 = vand.u32 %v269, 4294901760
    %271 = vmatpush1.msra.mxu0 %v270
    %272 = vmatprep.subr.mxu0 0.0
    %v273 = vand.u32 %v38, 4294901760
    %v274 = vsub.f32 %v38, %v273
    %v275 = vand.u32 %v274, 4294901760
    %v276 = vsub.f32 %v274, %v275
    %v277 = vand.u32 %v276, 4294901760
    %278 = vmatpush1.msra.mxu0 %v277
    %279 = vmatprep.subr.mxu0 0.0
    %v280 = vand.u32 %v39, 4294901760
    %v281 = vsub.f32 %v39, %v280
    %v282 = vand.u32 %v281, 4294901760
    %v283 = vsub.f32 %v281, %v282
    %v284 = vand.u32 %v283, 4294901760
    %285 = vmatpush1.msra.mxu0 %v284
    %286 = vmatprep.subr.mxu0 0.0
    %v287 = vand.u32 %v40, 4294901760
    %v288 = vsub.f32 %v40, %v287
    %v289 = vand.u32 %v288, 4294901760
    %v290 = vsub.f32 %v288, %v289
    %v291 = vand.u32 %v290, 4294901760
    %292 = vmatpush1.msra.mxu0 %v291
    %293 = vmatprep.subr.mxu0 0.0
    %v294 = vand.u32 %v41, 4294901760
    %v295 = vsub.f32 %v41, %v294
    %v296 = vand.u32 %v295, 4294901760
    %v297 = vsub.f32 %v295, %v296
    %v298 = vand.u32 %v297, 4294901760
    %299 = vmatpush1.msra.mxu0 %v298
    %300 = vmatprep.subr.mxu0 0.0
    %v301 = vand.u32 %v42, 4294901760
    %v302 = vsub.f32 %v42, %v301
    %v303 = vand.u32 %v302, 4294901760
    %v304 = vsub.f32 %v302, %v303
    %v305 = vand.u32 %v304, 4294901760
    %306 = vmatpush1.msra.mxu0 %v305
    %307 = vmatprep.subr.mxu0 0.0
    %v308 = vand.u32 %v43, 4294901760
    %v309 = vsub.f32 %v43, %v308
    %v310 = vand.u32 %v309, 4294901760
    %v311 = vsub.f32 %v309, %v310
    %v312 = vand.u32 %v311, 4294901760
    %313 = vmatpush1.msra.mxu0 %v312
    %314 = vmatprep.subr.mxu0 0.0
    %v315 = vand.u32 %v44, 4294901760
    %v316 = vsub.f32 %v44, %v315
    %v317 = vand.u32 %v316, 4294901760
    %v318 = vsub.f32 %v316, %v317
    %v319 = vand.u32 %v318, 4294901760
    %320 = vmatpush1.msra.mxu0 %v319
    %321 = vmatprep.subr.mxu0 0.0
    %v322 = vand.u32 %v45, 4294901760
    %v323 = vsub.f32 %v45, %v322
    %v324 = vand.u32 %v323, 4294901760
    %v325 = vsub.f32 %v323, %v324
    %v326 = vand.u32 %v325, 4294901760
    %327 = vmatpush1.msra.mxu0 %v326
    %328 = vmatprep.subr.mxu0 0.0
    %v329 = vand.u32 %v46, 4294901760
    %v330 = vsub.f32 %v46, %v329
    %v331 = vand.u32 %v330, 4294901760
    %v332 = vsub.f32 %v330, %v331
    %v333 = vand.u32 %v332, 4294901760
    %334 = vmatpush1.msra.mxu0 %v333
    %335 = vmatprep.subr.mxu0 0.0
    %v336 = vand.u32 %v47, 4294901760
    %v337 = vsub.f32 %v47, %v336
    %v338 = vand.u32 %v337, 4294901760
    %v339 = vsub.f32 %v337, %v338
    %v340 = vand.u32 %v339, 4294901760
    %341 = vmatpush1.msra.mxu0 %v340
    %342 = vmatprep.subr.mxu0 0.0
    %v343 = vand.u32 %v48, 4294901760
    %v344 = vsub.f32 %v48, %v343
    %v345 = vand.u32 %v344, 4294901760
    %v346 = vsub.f32 %v344, %v345
    %v347 = vand.u32 %v346, 4294901760
    %348 = vmatpush1.msra.mxu0 %v347
    %349 = vmatprep.subr.mxu0 0.0
    %v350 = vand.u32 %v49, 4294901760
    %v351 = vsub.f32 %v49, %v350
    %v352 = vand.u32 %v351, 4294901760
    %v353 = vsub.f32 %v351, %v352
    %v354 = vand.u32 %v353, 4294901760
    %355 = vmatpush1.msra.mxu0 %v354
    %356 = vmatprep.subr.mxu0 0.0
    %v357 = vand.u32 %v50, 4294901760
    %v358 = vsub.f32 %v50, %v357
    %v359 = vand.u32 %v358, 4294901760
    %v360 = vsub.f32 %v358, %v359
    %v361 = vand.u32 %v360, 4294901760
    %362 = vmatpush1.msra.mxu0 %v361
    %363 = vmatprep.subr.mxu0 0.0
    %v364 = vand.u32 %v51, 4294901760
    %v365 = vsub.f32 %v51, %v364
    %v366 = vand.u32 %v365, 4294901760
    %v367 = vsub.f32 %v365, %v366
    %v368 = vand.u32 %v367, 4294901760
    %369 = vmatpush1.msra.mxu0 %v368
    %370 = vmatprep.subr.mxu0 0.0
    %v371 = vand.u32 %v52, 4294901760
    %v372 = vsub.f32 %v52, %v371
    %v373 = vand.u32 %v372, 4294901760
    %v374 = vsub.f32 %v372, %v373
    %v375 = vand.u32 %v374, 4294901760
    %376 = vmatpush1.msra.mxu0 %v375
    %377 = vmatprep.subr.mxu0 0.0
    %v378 = vand.u32 %v53, 4294901760
    %v379 = vsub.f32 %v53, %v378
    %v380 = vand.u32 %v379, 4294901760
    %v381 = vsub.f32 %v379, %v380
    %v382 = vand.u32 %v381, 4294901760
    %383 = vmatpush1.msra.mxu0 %v382
    %384 = vmatprep.subr.mxu0 0.0
    %v385 = vand.u32 %v54, 4294901760
    %v386 = vsub.f32 %v54, %v385
    %v387 = vand.u32 %v386, 4294901760
    %v388 = vsub.f32 %v386, %v387
    %v389 = vand.u32 %v388, 4294901760
    %390 = vmatpush1.msra.mxu0 %v389
    %v391 = vand.u32 %v22, 4294901760
    %392 = vmatprep.mubr.f32.mxu0 %v391
    %v393 = vand.u32 %v21, 4294901760
    %394 = vmatmul.mubr.f32.gmra.mrb[0].mxu0 %v393
    %v395 = vpop.f32.mrb[0].mxu0
    %v396 = vadd.f32 %v164, %v395
    %v397 = vpop.f32.mrb[0].mxu0
    %398 = vdwg.mxu0
    %399 = vmatprep.subr.mxu0 0.0
    %v400 = vand.u32 %v23, 4294901760
    %v401 = vsub.f32 %v23, %v400
    %402 = vmatpush1.msra.mxu0 %v401
    %403 = vmatprep.subr.mxu0 0.0
    %v404 = vand.u32 %v24, 4294901760
    %v405 = vsub.f32 %v24, %v404
    %406 = vmatpush1.msra.mxu0 %v405
    %407 = vmatprep.subr.mxu0 0.0
    %v408 = vand.u32 %v25, 4294901760
    %v409 = vsub.f32 %v25, %v408
    %410 = vmatpush1.msra.mxu0 %v409
    %411 = vmatprep.subr.mxu0 0.0
    %v412 = vand.u32 %v26, 4294901760
    %v413 = vsub.f32 %v26, %v412
    %414 = vmatpush1.msra.mxu0 %v413
    %415 = vmatprep.subr.mxu0 0.0
    %v416 = vand.u32 %v27, 4294901760
    %v417 = vsub.f32 %v27, %v416
    %418 = vmatpush1.msra.mxu0 %v417
    %419 = vmatprep.subr.mxu0 0.0
    %v420 = vand.u32 %v28, 4294901760
    %v421 = vsub.f32 %v28, %v420
    %422 = vmatpush1.msra.mxu0 %v421
    %423 = vmatprep.subr.mxu0 0.0
    %v424 = vand.u32 %v29, 4294901760
    %v425 = vsub.f32 %v29, %v424
    %426 = vmatpush1.msra.mxu0 %v425
    %427 = vmatprep.subr.mxu0 0.0
    %v428 = vand.u32 %v30, 4294901760
    %v429 = vsub.f32 %v30, %v428
    %430 = vmatpush1.msra.mxu0 %v429
    %431 = vmatprep.subr.mxu0 0.0
    %v432 = vand.u32 %v31, 4294901760
    %v433 = vsub.f32 %v31, %v432
    %434 = vmatpush1.msra.mxu0 %v433
    %435 = vmatprep.subr.mxu0 0.0
    %v436 = vand.u32 %v32, 4294901760
    %v437 = vsub.f32 %v32, %v436
    %438 = vmatpush1.msra.mxu0 %v437
    %439 = vmatprep.subr.mxu0 0.0
    %v440 = vand.u32 %v33, 4294901760
    %v441 = vsub.f32 %v33, %v440
    %442 = vmatpush1.msra.mxu0 %v441
    %443 = vmatprep.subr.mxu0 0.0
    %v444 = vand.u32 %v34, 4294901760
    %v445 = vsub.f32 %v34, %v444
    %446 = vmatpush1.msra.mxu0 %v445
    %447 = vmatprep.subr.mxu0 0.0
    %v448 = vand.u32 %v35, 4294901760
    %v449 = vsub.f32 %v35, %v448
    %450 = vmatpush1.msra.mxu0 %v449
    %451 = vmatprep.subr.mxu0 0.0
    %v452 = vand.u32 %v36, 4294901760
    %v453 = vsub.f32 %v36, %v452
    %454 = vmatpush1.msra.mxu0 %v453
    %455 = vmatprep.subr.mxu0 0.0
    %v456 = vand.u32 %v37, 4294901760
    %v457 = vsub.f32 %v37, %v456
    %458 = vmatpush1.msra.mxu0 %v457
    %459 = vmatprep.subr.mxu0 0.0
    %v460 = vand.u32 %v38, 4294901760
    %v461 = vsub.f32 %v38, %v460
    %462 = vmatpush1.msra.mxu0 %v461
    %463 = vmatprep.subr.mxu0 0.0
    %v464 = vand.u32 %v39, 4294901760
    %v465 = vsub.f32 %v39, %v464
    %466 = vmatpush1.msra.mxu0 %v465
    %467 = vmatprep.subr.mxu0 0.0
    %v468 = vand.u32 %v40, 4294901760
    %v469 = vsub.f32 %v40, %v468
    %470 = vmatpush1.msra.mxu0 %v469
    %471 = vmatprep.subr.mxu0 0.0
    %v472 = vand.u32 %v41, 4294901760
    %v473 = vsub.f32 %v41, %v472
    %474 = vmatpush1.msra.mxu0 %v473
    %475 = vmatprep.subr.mxu0 0.0
    %v476 = vand.u32 %v42, 4294901760
    %v477 = vsub.f32 %v42, %v476
    %478 = vmatpush1.msra.mxu0 %v477
    %479 = vmatprep.subr.mxu0 0.0
    %v480 = vand.u32 %v43, 4294901760
    %v481 = vsub.f32 %v43, %v480
    %482 = vmatpush1.msra.mxu0 %v481
    %483 = vmatprep.subr.mxu0 0.0
    %v484 = vand.u32 %v44, 4294901760
    %v485 = vsub.f32 %v44, %v484
    %486 = vmatpush1.msra.mxu0 %v485
    %487 = vmatprep.subr.mxu0 0.0
    %v488 = vand.u32 %v45, 4294901760
    %v489 = vsub.f32 %v45, %v488
    %490 = vmatpush1.msra.mxu0 %v489
    %491 = vmatprep.subr.mxu0 0.0
    %v492 = vand.u32 %v46, 4294901760
    %v493 = vsub.f32 %v46, %v492
    %494 = vmatpush1.msra.mxu0 %v493
    %495 = vmatprep.subr.mxu0 0.0
    %v496 = vand.u32 %v47, 4294901760
    %v497 = vsub.f32 %v47, %v496
    %498 = vmatpush1.msra.mxu0 %v497
    %499 = vmatprep.subr.mxu0 0.0
    %v500 = vand.u32 %v48, 4294901760
    %v501 = vsub.f32 %v48, %v500
    %502 = vmatpush1.msra.mxu0 %v501
    %503 = vmatprep.subr.mxu0 0.0
    %v504 = vand.u32 %v49, 4294901760
    %v505 = vsub.f32 %v49, %v504
    %506 = vmatpush1.msra.mxu0 %v505
    %507 = vmatprep.subr.mxu0 0.0
    %v508 = vand.u32 %v50, 4294901760
    %v509 = vsub.f32 %v50, %v508
    %510 = vmatpush1.msra.mxu0 %v509
    %511 = vmatprep.subr.mxu0 0.0
    %v512 = vand.u32 %v51, 4294901760
    %v513 = vsub.f32 %v51, %v512
    %514 = vmatpush1.msra.mxu0 %v513
    %515 = vmatprep.subr.mxu0 0.0
    %v516 = vand.u32 %v52, 4294901760
    %v517 = vsub.f32 %v52, %v516
    %518 = vmatpush1.msra.mxu0 %v517
    %519 = vmatprep.subr.mxu0 0.0
    %v520 = vand.u32 %v53, 4294901760
    %v521 = vsub.f32 %v53, %v520
    %522 = vmatpush1.msra.mxu0 %v521
    %523 = vmatprep.subr.mxu0 0.0
    %v524 = vand.u32 %v54, 4294901760
    %v525 = vsub.f32 %v54, %v524
    %526 = vmatpush1.msra.mxu0 %v525
    %v527 = vand.u32 %v22, 4294901760
    %v528 = vsub.f32 %v22, %v527
    %529 = vmatprep.mubr.f32.mxu0 %v528
    %v530 = vand.u32 %v21, 4294901760
    %v531 = vsub.f32 %v21, %v530
    %532 = vmatmul.mubr.f32.gmra.mrb[0].mxu0 %v531
    %v533 = vpop.f32.mrb[0].mxu0
    %v534 = vadd.f32 %v396, %v533
    %v535 = vpop.f32.mrb[0].mxu0
    %536 = vdwg.mxu0
    %537 = vmatprep.subr.mxu0 0.0
    %v538 = vand.u32 %v23, 4294901760
    %539 = vmatpush1.msra.mxu0 %v538
    %540 = vmatprep.subr.mxu0 0.0
    %v541 = vand.u32 %v24, 4294901760
    %542 = vmatpush1.msra.mxu0 %v541
    %543 = vmatprep.subr.mxu0 0.0
    %v544 = vand.u32 %v25, 4294901760
    %545 = vmatpush1.msra.mxu0 %v544
    %546 = vmatprep.subr.mxu0 0.0
    %v547 = vand.u32 %v26, 4294901760
    %548 = vmatpush1.msra.mxu0 %v547
    %549 = vmatprep.subr.mxu0 0.0
    %v550 = vand.u32 %v27, 4294901760
    %551 = vmatpush1.msra.mxu0 %v550
    %552 = vmatprep.subr.mxu0 0.0
    %v553 = vand.u32 %v28, 4294901760
    %554 = vmatpush1.msra.mxu0 %v553
    %555 = vmatprep.subr.mxu0 0.0
    %v556 = vand.u32 %v29, 4294901760
    %557 = vmatpush1.msra.mxu0 %v556
    %558 = vmatprep.subr.mxu0 0.0
    %v559 = vand.u32 %v30, 4294901760
    %560 = vmatpush1.msra.mxu0 %v559
    %561 = vmatprep.subr.mxu0 0.0
    %v562 = vand.u32 %v31, 4294901760
    %563 = vmatpush1.msra.mxu0 %v562
    %564 = vmatprep.subr.mxu0 0.0
    %v565 = vand.u32 %v32, 4294901760
    %566 = vmatpush1.msra.mxu0 %v565
    %567 = vmatprep.subr.mxu0 0.0
    %v568 = vand.u32 %v33, 4294901760
    %569 = vmatpush1.msra.mxu0 %v568
    %570 = vmatprep.subr.mxu0 0.0
    %v571 = vand.u32 %v34, 4294901760
    %572 = vmatpush1.msra.mxu0 %v571
    %573 = vmatprep.subr.mxu0 0.0
    %v574 = vand.u32 %v35, 4294901760
    %575 = vmatpush1.msra.mxu0 %v574
    %576 = vmatprep.subr.mxu0 0.0
    %v577 = vand.u32 %v36, 4294901760
    %578 = vmatpush1.msra.mxu0 %v577
    %579 = vmatprep.subr.mxu0 0.0
    %v580 = vand.u32 %v37, 4294901760
    %581 = vmatpush1.msra.mxu0 %v580
    %582 = vmatprep.subr.mxu0 0.0
    %v583 = vand.u32 %v38, 4294901760
    %584 = vmatpush1.msra.mxu0 %v583
    %585 = vmatprep.subr.mxu0 0.0
    %v586 = vand.u32 %v39, 4294901760
    %587 = vmatpush1.msra.mxu0 %v586
    %588 = vmatprep.subr.mxu0 0.0
    %v589 = vand.u32 %v40, 4294901760
    %590 = vmatpush1.msra.mxu0 %v589
    %591 = vmatprep.subr.mxu0 0.0
    %v592 = vand.u32 %v41, 4294901760
    %593 = vmatpush1.msra.mxu0 %v592
    %594 = vmatprep.subr.mxu0 0.0
    %v595 = vand.u32 %v42, 4294901760
    %596 = vmatpush1.msra.mxu0 %v595
    %597 = vmatprep.subr.mxu0 0.0
    %v598 = vand.u32 %v43, 4294901760
    %599 = vmatpush1.msra.mxu0 %v598
    %600 = vmatprep.subr.mxu0 0.0
    %v601 = vand.u32 %v44, 4294901760
    %602 = vmatpush1.msra.mxu0 %v601
    %603 = vmatprep.subr.mxu0 0.0
    %v604 = vand.u32 %v45, 4294901760
    %605 = vmatpush1.msra.mxu0 %v604
    %606 = vmatprep.subr.mxu0 0.0
    %v607 = vand.u32 %v46, 4294901760
    %608 = vmatpush1.msra.mxu0 %v607
    %609 = vmatprep.subr.mxu0 0.0
    %v610 = vand.u32 %v47, 4294901760
    %611 = vmatpush1.msra.mxu0 %v610
    %612 = vmatprep.subr.mxu0 0.0
    %v613 = vand.u32 %v48, 4294901760
    %614 = vmatpush1.msra.mxu0 %v613
    %615 = vmatprep.subr.mxu0 0.0
    %v616 = vand.u32 %v49, 4294901760
    %617 = vmatpush1.msra.mxu0 %v616
    %618 = vmatprep.subr.mxu0 0.0
    %v619 = vand.u32 %v50, 4294901760
    %620 = vmatpush1.msra.mxu0 %v619
    %621 = vmatprep.subr.mxu0 0.0
    %v622 = vand.u32 %v51, 4294901760
    %623 = vmatpush1.msra.mxu0 %v622
    %624 = vmatprep.subr.mxu0 0.0
    %v625 = vand.u32 %v52, 4294901760
    %626 = vmatpush1.msra.mxu0 %v625
    %627 = vmatprep.subr.mxu0 0.0
    %v628 = vand.u32 %v53, 4294901760
    %629 = vmatpush1.msra.mxu0 %v628
    %630 = vmatprep.subr.mxu0 0.0
    %v631 = vand.u32 %v54, 4294901760
    %632 = vmatpush1.msra.mxu0 %v631
    %v633 = vand.u32 %v22, 4294901760
    %v634 = vsub.f32 %v22, %v633
    %v635 = vand.u32 %v634, 4294901760
    %636 = vmatprep.mubr.f32.mxu0 %v635
    %v637 = vand.u32 %v21, 4294901760
    %v638 = vsub.f32 %v21, %v637
    %v639 = vand.u32 %v638, 4294901760
    %640 = vmatmul.mubr.f32.gmra.mrb[0].mxu0 %v639
    %v641 = vpop.f32.mrb[0].mxu0
    %v642 = vadd.f32 %v534, %v641
    %v643 = vpop.f32.mrb[0].mxu0
    %644 = vdwg.mxu0
    %645 = vmatprep.subr.mxu0 0.0
    %v646 = vand.u32 %v23, 4294901760
    %v647 = vsub.f32 %v23, %v646
    %v648 = vand.u32 %v647, 4294901760
    %649 = vmatpush1.msra.mxu0 %v648
    %650 = vmatprep.subr.mxu0 0.0
    %v651 = vand.u32 %v24, 4294901760
    %v652 = vsub.f32 %v24, %v651
    %v653 = vand.u32 %v652, 4294901760
    %654 = vmatpush1.msra.mxu0 %v653
    %655 = vmatprep.subr.mxu0 0.0
    %v656 = vand.u32 %v25, 4294901760
    %v657 = vsub.f32 %v25, %v656
    %v658 = vand.u32 %v657, 4294901760
    %659 = vmatpush1.msra.mxu0 %v658
    %660 = vmatprep.subr.mxu0 0.0
    %v661 = vand.u32 %v26, 4294901760
    %v662 = vsub.f32 %v26, %v661
    %v663 = vand.u32 %v662, 4294901760
    %664 = vmatpush1.msra.mxu0 %v663
    %665 = vmatprep.subr.mxu0 0.0
    %v666 = vand.u32 %v27, 4294901760
    %v667 = vsub.f32 %v27, %v666
    %v668 = vand.u32 %v667, 4294901760
    %669 = vmatpush1.msra.mxu0 %v668
    %670 = vmatprep.subr.mxu0 0.0
    %v671 = vand.u32 %v28, 4294901760
    %v672 = vsub.f32 %v28, %v671
    %v673 = vand.u32 %v672, 4294901760
    %674 = vmatpush1.msra.mxu0 %v673
    %675 = vmatprep.subr.mxu0 0.0
    %v676 = vand.u32 %v29, 4294901760
    %v677 = vsub.f32 %v29, %v676
    %v678 = vand.u32 %v677, 4294901760
    %679 = vmatpush1.msra.mxu0 %v678
    %680 = vmatprep.subr.mxu0 0.0
    %v681 = vand.u32 %v30, 4294901760
    %v682 = vsub.f32 %v30, %v681
    %v683 = vand.u32 %v682, 4294901760
    %684 = vmatpush1.msra.mxu0 %v683
    %685 = vmatprep.subr.mxu0 0.0
    %v686 = vand.u32 %v31, 4294901760
    %v687 = vsub.f32 %v31, %v686
    %v688 = vand.u32 %v687, 4294901760
    %689 = vmatpush1.msra.mxu0 %v688
    %690 = vmatprep.subr.mxu0 0.0
    %v691 = vand.u32 %v32, 4294901760
    %v692 = vsub.f32 %v32, %v691
    %v693 = vand.u32 %v692, 4294901760
    %694 = vmatpush1.msra.mxu0 %v693
    %695 = vmatprep.subr.mxu0 0.0
    %v696 = vand.u32 %v33, 4294901760
    %v697 = vsub.f32 %v33, %v696
    %v698 = vand.u32 %v697, 4294901760
    %699 = vmatpush1.msra.mxu0 %v698
    %700 = vmatprep.subr.mxu0 0.0
    %v701 = vand.u32 %v34, 4294901760
    %v702 = vsub.f32 %v34, %v701
    %v703 = vand.u32 %v702, 4294901760
    %704 = vmatpush1.msra.mxu0 %v703
    %705 = vmatprep.subr.mxu0 0.0
    %v706 = vand.u32 %v35, 4294901760
    %v707 = vsub.f32 %v35, %v706
    %v708 = vand.u32 %v707, 4294901760
    %709 = vmatpush1.msra.mxu0 %v708
    %710 = vmatprep.subr.mxu0 0.0
    %v711 = vand.u32 %v36, 4294901760
    %v712 = vsub.f32 %v36, %v711
    %v713 = vand.u32 %v712, 4294901760
    %714 = vmatpush1.msra.mxu0 %v713
    %715 = vmatprep.subr.mxu0 0.0
    %v716 = vand.u32 %v37, 4294901760
    %v717 = vsub.f32 %v37, %v716
    %v718 = vand.u32 %v717, 4294901760
    %719 = vmatpush1.msra.mxu0 %v718
    %720 = vmatprep.subr.mxu0 0.0
    %v721 = vand.u32 %v38, 4294901760
    %v722 = vsub.f32 %v38, %v721
    %v723 = vand.u32 %v722, 4294901760
    %724 = vmatpush1.msra.mxu0 %v723
    %725 = vmatprep.subr.mxu0 0.0
    %v726 = vand.u32 %v39, 4294901760
    %v727 = vsub.f32 %v39, %v726
    %v728 = vand.u32 %v727, 4294901760
    %729 = vmatpush1.msra.mxu0 %v728
    %730 = vmatprep.subr.mxu0 0.0
    %v731 = vand.u32 %v40, 4294901760
    %v732 = vsub.f32 %v40, %v731
    %v733 = vand.u32 %v732, 4294901760
    %734 = vmatpush1.msra.mxu0 %v733
    %735 = vmatprep.subr.mxu0 0.0
    %v736 = vand.u32 %v41, 4294901760
    %v737 = vsub.f32 %v41, %v736
    %v738 = vand.u32 %v737, 4294901760
    %739 = vmatpush1.msra.mxu0 %v738
    %740 = vmatprep.subr.mxu0 0.0
    %v741 = vand.u32 %v42, 4294901760
    %v742 = vsub.f32 %v42, %v741
    %v743 = vand.u32 %v742, 4294901760
    %744 = vmatpush1.msra.mxu0 %v743
    %745 = vmatprep.subr.mxu0 0.0
    %v746 = vand.u32 %v43, 4294901760
    %v747 = vsub.f32 %v43, %v746
    %v748 = vand.u32 %v747, 4294901760
    %749 = vmatpush1.msra.mxu0 %v748
    %750 = vmatprep.subr.mxu0 0.0
    %v751 = vand.u32 %v44, 4294901760
    %v752 = vsub.f32 %v44, %v751
    %v753 = vand.u32 %v752, 4294901760
    %754 = vmatpush1.msra.mxu0 %v753
    %755 = vmatprep.subr.mxu0 0.0
    %v756 = vand.u32 %v45, 4294901760
    %v757 = vsub.f32 %v45, %v756
    %v758 = vand.u32 %v757, 4294901760
    %759 = vmatpush1.msra.mxu0 %v758
    %760 = vmatprep.subr.mxu0 0.0
    %v761 = vand.u32 %v46, 4294901760
    %v762 = vsub.f32 %v46, %v761
    %v763 = vand.u32 %v762, 4294901760
    %764 = vmatpush1.msra.mxu0 %v763
    %765 = vmatprep.subr.mxu0 0.0
    %v766 = vand.u32 %v47, 4294901760
    %v767 = vsub.f32 %v47, %v766
    %v768 = vand.u32 %v767, 4294901760
    %769 = vmatpush1.msra.mxu0 %v768
    %770 = vmatprep.subr.mxu0 0.0
    %v771 = vand.u32 %v48, 4294901760
    %v772 = vsub.f32 %v48, %v771
    %v773 = vand.u32 %v772, 4294901760
    %774 = vmatpush1.msra.mxu0 %v773
    %775 = vmatprep.subr.mxu0 0.0
    %v776 = vand.u32 %v49, 4294901760
    %v777 = vsub.f32 %v49, %v776
    %v778 = vand.u32 %v777, 4294901760
    %779 = vmatpush1.msra.mxu0 %v778
    %780 = vmatprep.subr.mxu0 0.0
    %v781 = vand.u32 %v50, 4294901760
    %v782 = vsub.f32 %v50, %v781
    %v783 = vand.u32 %v782, 4294901760
    %784 = vmatpush1.msra.mxu0 %v783
    %785 = vmatprep.subr.mxu0 0.0
    %v786 = vand.u32 %v51, 4294901760
    %v787 = vsub.f32 %v51, %v786
    %v788 = vand.u32 %v787, 4294901760
    %789 = vmatpush1.msra.mxu0 %v788
    %790 = vmatprep.subr.mxu0 0.0
    %v791 = vand.u32 %v52, 4294901760
    %v792 = vsub.f32 %v52, %v791
    %v793 = vand.u32 %v792, 4294901760
    %794 = vmatpush1.msra.mxu0 %v793
    %795 = vmatprep.subr.mxu0 0.0
    %v796 = vand.u32 %v53, 4294901760
    %v797 = vsub.f32 %v53, %v796
    %v798 = vand.u32 %v797, 4294901760
    %799 = vmatpush1.msra.mxu0 %v798
    %800 = vmatprep.subr.mxu0 0.0
    %v801 = vand.u32 %v54, 4294901760
    %v802 = vsub.f32 %v54, %v801
    %v803 = vand.u32 %v802, 4294901760
    %804 = vmatpush1.msra.mxu0 %v803
    %v805 = vand.u32 %v22, 4294901760
    %806 = vmatprep.mubr.f32.mxu0 %v805
    %v807 = vand.u32 %v21, 4294901760
    %808 = vmatmul.mubr.f32.gmra.mrb[0].mxu0 %v807
    %v809 = vpop.f32.mrb[0].mxu0
    %v810 = vadd.f32 %v642, %v809
    %v811 = vpop.f32.mrb[0].mxu0
    %812 = vdwg.mxu0
    %813 = vmatprep.subr.mxu0 0.0
    %v814 = vand.u32 %v23, 4294901760
    %815 = vmatpush1.msra.mxu0 %v814
    %816 = vmatprep.subr.mxu0 0.0
    %v817 = vand.u32 %v24, 4294901760
    %818 = vmatpush1.msra.mxu0 %v817
    %819 = vmatprep.subr.mxu0 0.0
    %v820 = vand.u32 %v25, 4294901760
    %821 = vmatpush1.msra.mxu0 %v820
    %822 = vmatprep.subr.mxu0 0.0
    %v823 = vand.u32 %v26, 4294901760
    %824 = vmatpush1.msra.mxu0 %v823
    %825 = vmatprep.subr.mxu0 0.0
    %v826 = vand.u32 %v27, 4294901760
    %827 = vmatpush1.msra.mxu0 %v826
    %828 = vmatprep.subr.mxu0 0.0
    %v829 = vand.u32 %v28, 4294901760
    %830 = vmatpush1.msra.mxu0 %v829
    %831 = vmatprep.subr.mxu0 0.0
    %v832 = vand.u32 %v29, 4294901760
    %833 = vmatpush1.msra.mxu0 %v832
    %834 = vmatprep.subr.mxu0 0.0
    %v835 = vand.u32 %v30, 4294901760
    %836 = vmatpush1.msra.mxu0 %v835
    %837 = vmatprep.subr.mxu0 0.0
    %v838 = vand.u32 %v31, 4294901760
    %839 = vmatpush1.msra.mxu0 %v838
    %840 = vmatprep.subr.mxu0 0.0
    %v841 = vand.u32 %v32, 4294901760
    %842 = vmatpush1.msra.mxu0 %v841
    %843 = vmatprep.subr.mxu0 0.0
    %v844 = vand.u32 %v33, 4294901760
    %845 = vmatpush1.msra.mxu0 %v844
    %846 = vmatprep.subr.mxu0 0.0
    %v847 = vand.u32 %v34, 4294901760
    %848 = vmatpush1.msra.mxu0 %v847
    %849 = vmatprep.subr.mxu0 0.0
    %v850 = vand.u32 %v35, 4294901760
    %851 = vmatpush1.msra.mxu0 %v850
    %852 = vmatprep.subr.mxu0 0.0
    %v853 = vand.u32 %v36, 4294901760
    %854 = vmatpush1.msra.mxu0 %v853
    %855 = vmatprep.subr.mxu0 0.0
    %v856 = vand.u32 %v37, 4294901760
    %857 = vmatpush1.msra.mxu0 %v856
    %858 = vmatprep.subr.mxu0 0.0
    %v859 = vand.u32 %v38, 4294901760
    %860 = vmatpush1.msra.mxu0 %v859
    %861 = vmatprep.subr.mxu0 0.0
    %v862 = vand.u32 %v39, 4294901760
    %863 = vmatpush1.msra.mxu0 %v862
    %864 = vmatprep.subr.mxu0 0.0
    %v865 = vand.u32 %v40, 4294901760
    %866 = vmatpush1.msra.mxu0 %v865
    %867 = vmatprep.subr.mxu0 0.0
    %v868 = vand.u32 %v41, 4294901760
    %869 = vmatpush1.msra.mxu0 %v868
    %870 = vmatprep.subr.mxu0 0.0
    %v871 = vand.u32 %v42, 4294901760
    %872 = vmatpush1.msra.mxu0 %v871
    %873 = vmatprep.subr.mxu0 0.0
    %v874 = vand.u32 %v43, 4294901760
    %875 = vmatpush1.msra.mxu0 %v874
    %876 = vmatprep.subr.mxu0 0.0
    %v877 = vand.u32 %v44, 4294901760
    %878 = vmatpush1.msra.mxu0 %v877
    %879 = vmatprep.subr.mxu0 0.0
    %v880 = vand.u32 %v45, 4294901760
    %881 = vmatpush1.msra.mxu0 %v880
    %882 = vmatprep.subr.mxu0 0.0
    %v883 = vand.u32 %v46, 4294901760
    %884 = vmatpush1.msra.mxu0 %v883
    %885 = vmatprep.subr.mxu0 0.0
    %v886 = vand.u32 %v47, 4294901760
    %887 = vmatpush1.msra.mxu0 %v886
    %888 = vmatprep.subr.mxu0 0.0
    %v889 = vand.u32 %v48, 4294901760
    %890 = vmatpush1.msra.mxu0 %v889
    %891 = vmatprep.subr.mxu0 0.0
    %v892 = vand.u32 %v49, 4294901760
    %893 = vmatpush1.msra.mxu0 %v892
    %894 = vmatprep.subr.mxu0 0.0
    %v895 = vand.u32 %v50, 4294901760
    %896 = vmatpush1.msra.mxu0 %v895
    %897 = vmatprep.subr.mxu0 0.0
    %v898 = vand.u32 %v51, 4294901760
    %899 = vmatpush1.msra.mxu0 %v898
    %900 = vmatprep.subr.mxu0 0.0
    %v901 = vand.u32 %v52, 4294901760
    %902 = vmatpush1.msra.mxu0 %v901
    %903 = vmatprep.subr.mxu0 0.0
    %v904 = vand.u32 %v53, 4294901760
    %905 = vmatpush1.msra.mxu0 %v904
    %906 = vmatprep.subr.mxu0 0.0
    %v907 = vand.u32 %v54, 4294901760
    %908 = vmatpush1.msra.mxu0 %v907
    %v909 = vand.u32 %v22, 4294901760
    %910 = vmatprep.mubr.f32.mxu0 %v909
    %v911 = vand.u32 %v21, 4294901760
    %912 = vmatmul.mubr.f32.gmra.mrb[0].mxu0 %v911
    %v913 = vpop.f32.mrb[0].mxu0
    %v914 = vadd.f32 %v810, %v913
    %v915 = vpop.f32.mrb[0].mxu0
    %916 = vdwg.mxu0
    %v917 = vmul.f32 %v914, 0.0625
    %v918 = vmax.f32 %v917, 1e-20
    %v919 = vlog2.pop %v918
    %v920 = vmul.f32 %v919, 0.6931472
    %vm921 = vcmask 130048
    %v922 = vsel %vm921, %v920, 0.0
    %923 = vadd.xlane.f32.xlu0 %v922
    %v924 = vpop.xlane.xlu0 %923
    %v925 = vrot.slane %v924, 4
    %v926 = vadd.f32 %v924, %v925
    %v927 = vrot.slane %v926, 2
    %v928 = vadd.f32 %v926, %v927
    %v929 = vrot.slane %v928, 1
    %v930 = vadd.f32 %v928, %v929
    %s931 = vtos %v930
    %v932 = vstv %s931
    %933 = vst [vmem:[#allocation2] sm:$0xff] %v932
    // Predicated region
    $region14: #{tpu_custom_call.1} parent=1 // pred_check
      _
    $region15: #{tpu_custom_call.1} parent=1 // pred_check_branch
      %935 = sbr.rel (0) target = $region17
    $region16: #{tpu_custom_call.1} parent=1 // pred_region
      %s937 = ssub.s32 128, 128
      %938 = vsyncadd [#allocation3], %s937
      %s940 = sshll.u32 [#allocation2], 4
      %s941 = int_to_ptr.vmem [resolvable:$true] %s940
      %943 = dma.vmem_to_hbm [thread:$0]  %s941, 128, %s3, [#allocation3]
    $region17: #{tpu_custom_call.1} parent=1 // pred_fallthru
      _
    // Predicated region
    $region18: #{tpu_custom_call.1} parent=1 // pred_check
      _
    $region19: #{tpu_custom_call.1} parent=1 // pred_check_branch
      %945 = sbr.rel (0) target = $region21
    $region20: #{tpu_custom_call.1} parent=1 // pred_region
      %946 = dma.done [#allocation3], 128
    $region21: #{tpu_custom_call.1} parent=1 // pred_fallthru
      _
    %947 = vsyncpa [#allocation3], 1

</llo_original>
